<compile_context>
chip_gen: v7x
topology: tpu7x:2x2x1
jax: 0.10.0
libtpu: 0.0.40
codegen_flags: <defaults>
</compile_context>

<pallas_src>
import jax
import jax.numpy as jnp
from jax.experimental import pallas as pl
from jax.experimental.pallas import tpu as pltpu

LANE = 128


def _round_up(n, m):
    return ((n + m - 1) // m) * m


# ---------------------------------------------------------------------------
# Fused kernel: all LayerBlocks + merged heads in one body
# ---------------------------------------------------------------------------
def _make_fused_kernel(layer_out_features, vec_offsets, head_cols):
    n_layers = len(layer_out_features)

    def kernel(*refs):
        # refs = [x, w_0 ... w_{L-1}, w_heads, vecs, out]
        x_ref = refs[0]
        w_refs = refs[1:1 + n_layers]
        w_heads_ref = refs[1 + n_layers]
        vecs_ref = refs[2 + n_layers]
        out_ref = refs[3 + n_layers]

        f = x_ref[...]
        for l in range(n_layers):
            w = w_refs[l][...]
            out_f = layer_out_features[l]
            off = vec_offsets[l]
            # MXU matmul (bf16 or f32 operands), f32 accumulation.
            y = jnp.dot(f.astype(w.dtype), w, preferred_element_type=jnp.float32)
            # Linear bias + eval-mode BN folded into a per-feature shift
            # (scale already folded into W); ReLU.  f32 epilogue on all chips.
            f = jnp.maximum(y + vecs_ref[:, off:off + out_f], 0.0)

        w_h = w_heads_ref[...]
        off = vec_offsets[n_layers]
        out = jnp.dot(f.astype(w_h.dtype), w_h, preferred_element_type=jnp.float32)
        out = out + vecs_ref[:, off:off + head_cols]
        out_ref[...] = out.astype(out_ref.dtype)   # lane-dense (head_cols % 128 == 0)

    return kernel


# ---------------------------------------------------------------------------
# Wrapper
# ---------------------------------------------------------------------------
def dual_net_forward(x, fused):
    B, f_in = x.shape
    layer_ws = fused["layer_ws"]
    w_heads = fused["w_heads"]
    vecs = fused["vecs"]
    head_cols = int(w_heads.shape[1])           # padded to multiple of 128
    n_classes = fused["n_classes"]
    out_dim = fused["out_dim"]

    # Batch grid axis: large tiles to amortize per-step overhead; "parallel"
    # shards across v7x's 2 TensorCores and pipelines the x/out DMAs.
    TB = 512 if B >= 512 else B
    grid = (pl.cdiv(B, TB),)

    def resident_spec(arr):
        nd = arr.ndim
        return pl.BlockSpec(arr.shape, lambda i, _nd=nd: (0,) * _nd)

    weight_inputs = list(layer_ws) + [w_heads, vecs]
    in_specs = ([pl.BlockSpec((TB, f_in), lambda i: (i, 0))]
                + [resident_spec(a) for a in weight_inputs])
    out_specs = pl.BlockSpec((TB, head_cols), lambda i: (i, 0))

    # Cost hint for XLA's scheduler.
    flops = 0
    for w in layer_ws:
        flops += 2 * B * int(w.shape[0]) * int(w.shape[1])
    flops += 2 * B * int(w_heads.shape[0]) * head_cols
    bytes_accessed = int(x.size * x.dtype.itemsize
                         + sum(int(a.size) * a.dtype.itemsize for a in weight_inputs)
                         + B * head_cols * x.dtype.itemsize)

    # Explicit VMEM budget (v7x: 64 MiB physical, 32 MiB scoped default;
    # v5e: 16 MiB scoped default).  Tiny here, but stated explicitly.
    resident_bytes = sum(int(a.size) * a.dtype.itemsize for a in weight_inputs)
    block_bytes = 2 * TB * (f_in + head_cols) * x.dtype.itemsize   # double-buffered x/out
    vmem_limit = int(min(64 << 20, max(16 << 20, 2 * (resident_bytes + block_bytes))))

    out = pl.pallas_call(
        _make_fused_kernel(fused["layer_out_features"], fused["vec_offsets"], head_cols),
        grid=grid,
        out_shape=jax.ShapeDtypeStruct((B, head_cols), x.dtype),
        in_specs=in_specs,
        out_specs=out_specs,
        compiler_params=pltpu.CompilerParams(
            dimension_semantics=("parallel",),
            vmem_limit_bytes=vmem_limit),
        cost_estimate=pl.CostEstimate(
            flops=int(flops), transcendentals=0, bytes_accessed=bytes_accessed),
    )(x, *weight_inputs)

    class_predictions = out[:, :n_classes]
    cluster_mapping = out[:, n_classes:n_classes + out_dim]
    return class_predictions, cluster_mapping


# ---------------------------------------------------------------------------
# Deterministic parameter construction (shapes from DualNet.__init__)
# ---------------------------------------------------------------------------
def _linear_params(key, in_f, out_f):
    k_w, k_b = jax.random.split(key)
    bound = 1.0 / jnp.sqrt(jnp.float32(in_f))
    w = jax.random.uniform(k_w, (in_f, out_f), jnp.float32, -bound, bound)
    b = jax.random.uniform(k_b, (1, out_f), jnp.float32, -bound, bound)
    return w, b


def init_raw_params(key, n_features, n_classes=10, out_dim=2, eps=1e-5):
    raw = {"layers": [], "n_classes": n_classes, "out_dim": out_dim, "eps": eps}
    for in_f, out_f in zip(n_features[:-1], n_features[1:]):
        key, k_lin, k_g, k_b, k_m, k_v = jax.random.split(key, 6)
        w, b = _linear_params(k_lin, in_f, out_f)
        # Non-trivial eval-mode BN stats to exercise the fold.
        gamma = jax.random.uniform(k_g, (1, out_f), jnp.float32, 0.5, 1.5)
        beta = 0.1 * jax.random.normal(k_b, (1, out_f), jnp.float32)
        running_mean = 0.1 * jax.random.normal(k_m, (1, out_f), jnp.float32)
        running_var = jax.random.uniform(k_v, (1, out_f), jnp.float32, 0.5, 1.5)
        raw["layers"].append((w, b, gamma, beta, running_mean, running_var))
    key, k_cls, k_clu = jax.random.split(key, 3)
    raw["classifier"] = _linear_params(k_cls, n_features[-1], n_classes)
    raw["clustering"] = _linear_params(k_clu, n_features[-1], out_dim)
    return raw


def fuse_params(raw, weights_dtype=jnp.float32):
    """Fold Linear bias + eval-mode BN into W (scale) and a per-feature shift.

    Also merges + zero-pads the two heads to a lane-dense (multiple of 128)
    output slab, and packs all shift/bias vectors into one 128-aligned array.
    weights_dtype=jnp.bfloat16 is recommended on v6e/v7x (f32 accumulation is
    kept inside the kernel either way).
    """
    eps = raw["eps"]
    layer_ws, layer_out_features = [], []
    vec_segments, vec_offsets = [], []
    off = 0
    for (w, b, gamma, beta, mean, var) in raw["layers"]:
        scale = gamma / jnp.sqrt(var + eps)            # (1, out_f)
        shift = (b - mean) * scale + beta              # f32, bias folded in
        layer_ws.append((w * scale).astype(weights_dtype))   # scale folded into W
        out_f = int(w.shape[1])
        layer_out_features.append(out_f)
        seg_w = _round_up(out_f, LANE)                 # 128-aligned packing
        seg = jnp.zeros((1, seg_w), jnp.float32).at[:, :out_f].set(shift)
        vec_segments.append(seg)
        vec_offsets.append(off)
        off += seg_w

    wc, bc = raw["classifier"]
    wk, bk = raw["clustering"]
    w_heads = jnp.concatenate([wc, wk], axis=1)
    b_heads = jnp.concatenate([bc, bk], axis=1)
    head_logical = int(w_heads.shape[1])
    head_cols = _round_up(head_logical, LANE)          # lane-dense output slab
    w_heads_p = jnp.zeros((w_heads.shape[0], head_cols), jnp.float32)
    w_heads_p = w_heads_p.at[:, :head_logical].set(w_heads).astype(weights_dtype)
    b_seg = jnp.zeros((1, head_cols), jnp.float32).at[:, :head_logical].set(b_heads)
    vec_segments.append(b_seg)
    vec_offsets.append(off)

    return {
        "layer_ws": layer_ws,
        "layer_out_features": layer_out_features,
        "w_heads": w_heads_p,
        "vecs": jnp.concatenate(vec_segments, axis=1),   # single packed f32 array
        "vec_offsets": vec_offsets,
        "n_classes": raw["n_classes"],
        "out_dim": raw["out_dim"],
    }


# ---------------------------------------------------------------------------
# Reference (pure JAX, un-fused formula) for sanity check
# ---------------------------------------------------------------------------
def dual_net_reference(x, raw):
    eps = raw["eps"]
    f = x
    for (w, b, gamma, beta, mean, var) in raw["layers"]:
        y = f @ w + b
        y = (y - mean) / jnp.sqrt(var + eps) * gamma + beta
        f = jnp.maximum(y, 0.0)
    wc, bc = raw["classifier"]
    wk, bk = raw["clustering"]
    return f @ wc + bc, f @ wk + bk


if __name__ == "__main__":
    key = jax.random.PRNGKey(0)
    k_param, k_x = jax.random.split(key)

    n_features = [16, 32, 32]            # DualNet(n_features=[16, 32, 32])
    n_classes, out_dim, batch = 10, 2, 8

    raw_params = init_raw_params(k_param, n_features, n_classes, out_dim)
    x = jax.random.normal(k_x, (batch, n_features[0]), jnp.float32)
    ref_cls, ref_clu = dual_net_reference(x, raw_params)

    # f32 weights: exact match against the un-fused reference.
    fused_f32 = fuse_params(raw_params, weights_dtype=jnp.float32)
    cls_out, clu_out = dual_net_forward(x, fused_f32)
    jax.block_until_ready((cls_out, clu_out))
    assert cls_out.shape == (batch, n_classes)
    assert clu_out.shape == (batch, out_dim)
    assert jnp.allclose(cls_out, ref_cls, atol=1e-5, rtol=1e-5)
    assert jnp.allclose(clu_out, ref_clu, atol=1e-5, rtol=1e-5)

    # bf16 weights (recommended on v6e/v7x): bf16 MXU operands, f32 accumulate
    # and f32 epilogue; tolerance loosened for bf16 rounding.
    fused_bf16 = fuse_params(raw_params, weights_dtype=jnp.bfloat16)
    cls_bf, clu_bf = dual_net_forward(x, fused_bf16)
    jax.block_until_ready((cls_bf, clu_bf))
    assert jnp.allclose(cls_bf, ref_cls, atol=1e-1, rtol=1e-1)
    assert jnp.allclose(clu_bf, ref_clu, atol=1e-1, rtol=1e-1)

    print("KERNEL_OK")
</pallas_src>

<mosaic_0001>
module attributes {stable_mosaic.version = 11 : i64} {
  func.func @kernel(%arg0: i32, %arg1: memref<8x16xf32, #tpu.memory_space<vmem>>, %arg2: memref<16x32xf32, #tpu.memory_space<vmem>>, %arg3: memref<32x32xf32, #tpu.memory_space<vmem>>, %arg4: memref<32x128xf32, #tpu.memory_space<vmem>>, %arg5: memref<1x384xf32, #tpu.memory_space<vmem>>, %arg6: memref<8x128xf32, #tpu.memory_space<vmem>>) attributes {dimension_semantics = [#tpu.dimension_semantics<parallel>], iteration_bounds = array<i64: 1>, scalar_prefetch = 0 : i64, scratch_operands = 0 : i64, tpu.core_type = #tpu.core_type<tc>, window_params = [{transform_indices = @transform_0, window_bounds = array<i64: 8, 16>}, {pipeline_mode = #tpu.pipeline_mode<synchronous>, transform_indices = @transform_1, window_bounds = array<i64: 16, 32>}, {pipeline_mode = #tpu.pipeline_mode<synchronous>, transform_indices = @transform_2, window_bounds = array<i64: 32, 32>}, {pipeline_mode = #tpu.pipeline_mode<synchronous>, transform_indices = @transform_3, window_bounds = array<i64: 32, 128>}, {pipeline_mode = #tpu.pipeline_mode<synchronous>, transform_indices = @transform_4, window_bounds = array<i64: 1, 384>}, {transform_indices = @transform_5, window_bounds = array<i64: 8, 128>}]} {
    %c0 = arith.constant 0 : index
    %c0_0 = arith.constant 0 : index
    %0 = vector.load %arg1[%c0, %c0_0] : memref<8x16xf32, #tpu.memory_space<vmem>>, vector<8x16xf32>
    %c0_1 = arith.constant 0 : index
    %c0_2 = arith.constant 0 : index
    %1 = vector.load %arg2[%c0_1, %c0_2] : memref<16x32xf32, #tpu.memory_space<vmem>>, vector<16x32xf32>
    %cst = arith.constant dense<0.000000e+00> : vector<8x32xf32>
    %2 = tpu.matmul %0, %1, %cst {dimension_numbers = #tpu.dot_dimension_numbers<[1], [0], [0], [1], [0, 0, 1, 1], [], []>} : vector<8x16xf32>, vector<16x32xf32>, vector<8x32xf32> -> vector<8x32xf32>
    %c0_3 = arith.constant 0 : index
    %c0_4 = arith.constant 0 : index
    %3 = vector.load %arg5[%c0_3, %c0_4] : memref<1x384xf32, #tpu.memory_space<vmem>>, vector<1x32xf32>
    %4 = vector.broadcast %3 : vector<1x32xf32> to vector<8x32xf32>
    %5 = arith.addf %2, %4 : vector<8x32xf32>
    %cst_5 = arith.constant 0.000000e+00 : f32
    %6 = vector.broadcast %cst_5 : f32 to vector<8x32xf32>
    %7 = arith.maximumf %5, %6 : vector<8x32xf32>
    %c0_6 = arith.constant 0 : index
    %c0_7 = arith.constant 0 : index
    %8 = vector.load %arg3[%c0_6, %c0_7] : memref<32x32xf32, #tpu.memory_space<vmem>>, vector<32x32xf32>
    %cst_8 = arith.constant dense<0.000000e+00> : vector<8x32xf32>
    %9 = tpu.matmul %7, %8, %cst_8 {dimension_numbers = #tpu.dot_dimension_numbers<[1], [0], [0], [1], [0, 0, 1, 1], [], []>} : vector<8x32xf32>, vector<32x32xf32>, vector<8x32xf32> -> vector<8x32xf32>
    %c0_9 = arith.constant 0 : index
    %c128 = arith.constant 128 : index
    %10 = vector.load %arg5[%c0_9, %c128] : memref<1x384xf32, #tpu.memory_space<vmem>>, vector<1x32xf32>
    %11 = vector.broadcast %10 : vector<1x32xf32> to vector<8x32xf32>
    %12 = arith.addf %9, %11 : vector<8x32xf32>
    %cst_10 = arith.constant 0.000000e+00 : f32
    %13 = vector.broadcast %cst_10 : f32 to vector<8x32xf32>
    %14 = arith.maximumf %12, %13 : vector<8x32xf32>
    %c0_11 = arith.constant 0 : index
    %c0_12 = arith.constant 0 : index
    %15 = vector.load %arg4[%c0_11, %c0_12] : memref<32x128xf32, #tpu.memory_space<vmem>>, vector<32x128xf32>
    %cst_13 = arith.constant dense<0.000000e+00> : vector<8x128xf32>
    %16 = tpu.matmul %14, %15, %cst_13 {dimension_numbers = #tpu.dot_dimension_numbers<[1], [0], [0], [1], [0, 0, 1, 1], [], []>} : vector<8x32xf32>, vector<32x128xf32>, vector<8x128xf32> -> vector<8x128xf32>
    %c0_14 = arith.constant 0 : index
    %c256 = arith.constant 256 : index
    %17 = vector.load %arg5[%c0_14, %c256] : memref<1x384xf32, #tpu.memory_space<vmem>>, vector<1x128xf32>
    %18 = vector.broadcast %17 : vector<1x128xf32> to vector<8x128xf32>
    %19 = arith.addf %16, %18 : vector<8x128xf32>
    %c0_15 = arith.constant 0 : index
    %c0_16 = arith.constant 0 : index
    %20 = vector.load %arg6[%c0_15, %c0_16] : memref<8x128xf32, #tpu.memory_space<vmem>>, vector<8x128xf32>
    tpu.vector_store %arg6[%c0_15, %c0_16], %19 {strides = array<i32>} : memref<8x128xf32, #tpu.memory_space<vmem>>, vector<8x128xf32>,
    return
  }
  func.func @transform_0(%arg0: i32) -> (i32, i32) {
    %c0_i32 = arith.constant 0 : i32
    %c0_i32_0 = arith.constant 0 : i32
    return %arg0, %c0_i32 : i32, i32
  }
  func.func @transform_1(%arg0: i32) -> (i32, i32) {
    %c0_i32 = arith.constant 0 : i32
    %c0_i32_0 = arith.constant 0 : i32
    %c0_i32_1 = arith.constant 0 : i32
    return %c0_i32, %c0_i32_0 : i32, i32
  }
  func.func @transform_2(%arg0: i32) -> (i32, i32) {
    %c0_i32 = arith.constant 0 : i32
    %c0_i32_0 = arith.constant 0 : i32
    %c0_i32_1 = arith.constant 0 : i32
    return %c0_i32, %c0_i32_0 : i32, i32
  }
  func.func @transform_3(%arg0: i32) -> (i32, i32) {
    %c0_i32 = arith.constant 0 : i32
    %c0_i32_0 = arith.constant 0 : i32
    %c0_i32_1 = arith.constant 0 : i32
    return %c0_i32, %c0_i32_0 : i32, i32
  }
  func.func @transform_4(%arg0: i32) -> (i32, i32) {
    %c0_i32 = arith.constant 0 : i32
    %c0_i32_0 = arith.constant 0 : i32
    %c0_i32_1 = arith.constant 0 : i32
    return %c0_i32, %c0_i32_0 : i32, i32
  }
  func.func @transform_5(%arg0: i32) -> (i32, i32) {
    %c0_i32 = arith.constant 0 : i32
    %c0_i32_0 = arith.constant 0 : i32
    return %arg0, %c0_i32 : i32, i32
  }
}

</mosaic_0001>

<llo_original>
// kernel: tpu_custom_call.1
$region0: #{tpu_custom_call.1}
  #allocation0 [shape = 'u32[]', space=smem, size = 0x4, offset = 0x4, fixed_abs, tag = 'smem constant byte address 0x4 - core index']
  #allocation1 [shape = 'u32[144,128]{1,0:T(1,128)}', space=vmem, size = 0x12000, scoped, tag = 'internal scratch']
  %s0 = inlined_call_operand.hbm [shape: f32[8,16], index: 0, kind: input, shape index: {}]
  %s1 = inlined_call_operand.hbm [shape: f32[16,32], index: 1, kind: input, shape index: {}]
  %s2 = inlined_call_operand.hbm [shape: f32[32,32], index: 2, kind: input, shape index: {}]
  %s3 = inlined_call_operand.hbm [shape: f32[32,128], index: 3, kind: input, shape index: {}]
  %s4 = inlined_call_operand.vmem [shape: f32[1,384], index: 4, kind: input, shape index: {}]
  %s5 = inlined_call_operand.hbm [shape: f32[8,128], index: 5, kind: output, shape index: {}]
  %s6 = sld [smem:[#allocation0]]
  $region46: #{tpu_custom_call.1} parent=0
    _
  %s8 = ssub.s32 1, %s6
  %s9 = scalar_select 0, %s8, %s6
  $region1: #{tpu_custom_call.1} parent=0
    #allocation2 [shape = 'u8[4096]{0}', space=vmem, size = 0x1000, scoped, tag = 'input window, operand 0, single buffered']
    #allocation3 [shape = 's32[1]{0}', space=sflag, size = 0x4, scoped, tag = 'scoped memory for tpu_custom_call.1']
    #allocation4 [shape = 's32[1]{0}', space=sflag, size = 0x4, scoped, tag = 'scoped memory for tpu_custom_call.1']
    #allocation5 [shape = 'u8[8192]{0}', space=vmem, size = 0x2000, scoped, tag = 'input window, operand 1, single buffered']
    #allocation6 [shape = 's32[1]{0}', space=sflag, size = 0x4, scoped, tag = 'scoped memory for tpu_custom_call.1']
    #allocation7 [shape = 'u8[16384]{0}', space=vmem, size = 0x4000, scoped, tag = 'input window, operand 2, single buffered']
    #allocation8 [shape = 'u8[16384]{0}', space=vmem, size = 0x4000, scoped, tag = 'input window, operand 3, single buffered']
    #allocation9 [shape = 's32[1]{0}', space=sflag, size = 0x4, scoped, tag = 'scoped memory for tpu_custom_call.1']
    #allocation10 [shape = 'u8[4096]{0}', space=vmem, size = 0x1000, scoped, tag = 'output window, operand 0, single buffered']
    %10 = vsyncpa [#allocation3], 0
    %11 = vsyncpa [#allocation6], 0
    %12 = vsyncpa [#allocation9], 0
    %13 = vsyncpa [#allocation4], 0
    // Predicated region
    $region2: #{tpu_custom_call.1} parent=1 // pred_check
      _
    $region3: #{tpu_custom_call.1} parent=1 // pred_check_branch
      %15 = sbr.rel (0) target = $region5
    $region4: #{tpu_custom_call.1} parent=1 // pred_region
      %s17 = ssub.s32 128, 128
      %18 = vsyncadd [#allocation3], %s17
      %s20 = sshll.u32 [#allocation2], 4
      %s21 = int_to_ptr.vmem [resolvable:$true] %s20
      %23 = dma.hbm_to_vmem [thread:$0]  %s0, 128, %s21, [#allocation3]
    $region5: #{tpu_custom_call.1} parent=1 // pred_fallthru
      _
    // Predicated region
    $region6: #{tpu_custom_call.1} parent=1 // pred_check
      _
    $region7: #{tpu_custom_call.1} parent=1 // pred_check_branch
      %25 = sbr.rel (0) target = $region9
    $region8: #{tpu_custom_call.1} parent=1 // pred_region
      %s27 = ssub.s32 256, 256
      %28 = vsyncadd [#allocation6], %s27
      %s29 = sshll.u32 [#allocation5], 4
      %s30 = int_to_ptr.vmem [resolvable:$true] %s29
      %35 = dma.hbm_to_vmem [thread:$0]  %s1, 256, %s30, [#allocation6], 128, 128, 8
    $region9: #{tpu_custom_call.1} parent=1 // pred_fallthru
      _
    // Predicated region
    $region10: #{tpu_custom_call.1} parent=1 // pred_check
      _
    $region11: #{tpu_custom_call.1} parent=1 // pred_check_branch
      %37 = sbr.rel (0) target = $region13
    $region12: #{tpu_custom_call.1} parent=1 // pred_region
      %s39 = ssub.s32 512, 512
      %40 = vsyncadd [#allocation6], %s39
      %s41 = sshll.u32 [#allocation7], 4
      %s42 = int_to_ptr.vmem [resolvable:$true] %s41
      %47 = dma.hbm_to_vmem [thread:$0]  %s2, 512, %s42, [#allocation6], 128, 128, 8
    $region13: #{tpu_custom_call.1} parent=1 // pred_fallthru
      _
    // Predicated region
    $region14: #{tpu_custom_call.1} parent=1 // pred_check
      _
    $region15: #{tpu_custom_call.1} parent=1 // pred_check_branch
      %49 = sbr.rel (0) target = $region17
    $region16: #{tpu_custom_call.1} parent=1 // pred_region
      %s51 = ssub.s32 512, 512
      %52 = vsyncadd [#allocation9], %s51
      %s53 = sshll.u32 [#allocation8], 4
      %s54 = int_to_ptr.vmem [resolvable:$true] %s53
      %59 = dma.hbm_to_vmem [thread:$0]  %s3, 512, %s54, [#allocation9], 128, 128, 8
    $region17: #{tpu_custom_call.1} parent=1 // pred_fallthru
      _
    // Predicated region
    $region18: #{tpu_custom_call.1} parent=1 // pred_check
      _
    $region19: #{tpu_custom_call.1} parent=1 // pred_check_branch
      %61 = sbr.rel (0) target = $region21
    $region20: #{tpu_custom_call.1} parent=1 // pred_region
      _
    $region21: #{tpu_custom_call.1} parent=1 // pred_fallthru
      _
    // Predicated region
    $region22: #{tpu_custom_call.1} parent=1 // pred_check
      _
    $region23: #{tpu_custom_call.1} parent=1 // pred_check_branch
      %63 = sbr.rel (0) target = $region25
    $region24: #{tpu_custom_call.1} parent=1 // pred_region
      %64 = dma.done [#allocation3], 128
    $region25: #{tpu_custom_call.1} parent=1 // pred_fallthru
      _
    // Predicated region
    $region26: #{tpu_custom_call.1} parent=1 // pred_check
      _
    $region27: #{tpu_custom_call.1} parent=1 // pred_check_branch
      %66 = sbr.rel (0) target = $region29
    $region28: #{tpu_custom_call.1} parent=1 // pred_region
      %67 = dma.done [#allocation6], 256
    $region29: #{tpu_custom_call.1} parent=1 // pred_fallthru
      _
    // Predicated region
    $region30: #{tpu_custom_call.1} parent=1 // pred_check
      _
    $region31: #{tpu_custom_call.1} parent=1 // pred_check_branch
      %69 = sbr.rel (0) target = $region33
    $region32: #{tpu_custom_call.1} parent=1 // pred_region
      %70 = dma.done [#allocation6], 512
    $region33: #{tpu_custom_call.1} parent=1 // pred_fallthru
      _
    // Predicated region
    $region34: #{tpu_custom_call.1} parent=1 // pred_check
      _
    $region35: #{tpu_custom_call.1} parent=1 // pred_check_branch
      %72 = sbr.rel (0) target = $region37
    $region36: #{tpu_custom_call.1} parent=1 // pred_region
      %73 = dma.done [#allocation9], 512
    $region37: #{tpu_custom_call.1} parent=1 // pred_fallthru
      _
    %v74 = vld [vmem:[#allocation2] sm:$0xff]
    %v75 = vld [vmem:[#allocation5] sm:$0xff]
    %v76 = vld [vmem:[#allocation5 + $0x8] sm:$0xff]
    %v77 = vld [vmem:[%s4] sm:$0x1]
    %v79 = vlaneseq
    %v80 = vshrl.u32 %v79, 7
    %v81 = vsub.s32 0, %v80
    %v82 = vrot.slane %v77, %v81
    %vm84 = vcmask 130048
    %v86 = vsel %vm84, %v74, 0
    %88 = vmatprep.subr.mxu0 0.0
    %89 = vmatpush1.msra.mxu0 %v75
    %90 = vmatprep.subr.mxu0 0.0
    %91 = vmatpush1.msra.mxu0 %v76
    %92 = vmatprep.subr.mxu0 0.0
    %93 = vmatpush1.msra.mxu0 0.0
    %94 = vmatprep.subr.mxu0 0.0
    %95 = vmatpush1.msra.mxu0 0.0
    %96 = vmatprep.subr.mxu0 0.0
    %97 = vmatpush1.msra.mxu0 0.0
    %98 = vmatprep.subr.mxu0 0.0
    %99 = vmatpush1.msra.mxu0 0.0
    %100 = vmatprep.subr.mxu0 0.0
    %101 = vmatpush1.msra.mxu0 0.0
    %102 = vmatprep.subr.mxu0 0.0
    %103 = vmatpush1.msra.mxu0 0.0
    %104 = vmatprep.subr.mxu0 0.0
    %105 = vmatpush1.msra.mxu0 0.0
    %106 = vmatprep.subr.mxu0 0.0
    %107 = vmatpush1.msra.mxu0 0.0
    %108 = vmatprep.subr.mxu0 0.0
    %109 = vmatpush1.msra.mxu0 0.0
    %110 = vmatprep.subr.mxu0 0.0
    %111 = vmatpush1.msra.mxu0 0.0
    %112 = vmatprep.subr.mxu0 0.0
    %113 = vmatpush1.msra.mxu0 0.0
    %114 = vmatprep.subr.mxu0 0.0
    %115 = vmatpush1.msra.mxu0 0.0
    %116 = vmatprep.subr.mxu0 0.0
    %117 = vmatpush1.msra.mxu0 0.0
    %118 = vmatprep.subr.mxu0 0.0
    %119 = vmatpush1.msra.mxu0 0.0
    %120 = vmatprep.subr.mxu0 0.0
    %121 = vmatpush1.msra.mxu0 0.0
    %122 = vmatprep.subr.mxu0 0.0
    %123 = vmatpush1.msra.mxu0 0.0
    %124 = vmatprep.subr.mxu0 0.0
    %125 = vmatpush1.msra.mxu0 0.0
    %126 = vmatprep.subr.mxu0 0.0
    %127 = vmatpush1.msra.mxu0 0.0
    %128 = vmatprep.subr.mxu0 0.0
    %129 = vmatpush1.msra.mxu0 0.0
    %130 = vmatprep.subr.mxu0 0.0
    %131 = vmatpush1.msra.mxu0 0.0
    %132 = vmatprep.subr.mxu0 0.0
    %133 = vmatpush1.msra.mxu0 0.0
    %134 = vmatprep.subr.mxu0 0.0
    %135 = vmatpush1.msra.mxu0 0.0
    %136 = vmatprep.subr.mxu0 0.0
    %137 = vmatpush1.msra.mxu0 0.0
    %138 = vmatprep.subr.mxu0 0.0
    %139 = vmatpush1.msra.mxu0 0.0
    %140 = vmatprep.subr.mxu0 0.0
    %141 = vmatpush1.msra.mxu0 0.0
    %142 = vmatprep.subr.mxu0 0.0
    %143 = vmatpush1.msra.mxu0 0.0
    %144 = vmatprep.subr.mxu0 0.0
    %145 = vmatpush1.msra.mxu0 0.0
    %146 = vmatprep.subr.mxu0 0.0
    %147 = vmatpush1.msra.mxu0 0.0
    %148 = vmatprep.subr.mxu0 0.0
    %149 = vmatpush1.msra.mxu0 0.0
    %150 = vmatprep.subr.mxu0 0.0
    %151 = vmatpush1.msra.mxu0 0.0
    %152 = vmatprep.mubr.f32.mxu0 0.0
    %153 = vmatmul.mubr.f32.gmra.mrb[0].mxu0 %v86
    %v154 = vpop.f32.mrb[0].mxu0
    %v155 = vadd.f32 %v82, %v154
    %v156 = vpop.f32.mrb[0].mxu0
    %157 = vdwg.mxu0
    %v158 = vmax.f32 %v155, 0.0
    %v159 = vld [vmem:[#allocation7] sm:$0xff]
    %v160 = vld [vmem:[#allocation7 + $0x8] sm:$0xff]
    %v161 = vld [vmem:[#allocation7 + $0x10] sm:$0xff]
    %v162 = vld [vmem:[#allocation7 + $0x18] sm:$0xff]
    %v163 = vld [vmem:[%s4 + $0x1] sm:$0x1]
    %v165 = vlaneseq
    %v166 = vshrl.u32 %v165, 7
    %v167 = vsub.s32 0, %v166
    %v168 = vrot.slane %v163, %v167
    %vm170 = vcmask 261120
    %v172 = vsel %vm170, %v158, 0
    %174 = vmatprep.subr.mxu0 0.0
    %175 = vmatpush1.msra.mxu0 %v159
    %176 = vmatprep.subr.mxu0 0.0
    %177 = vmatpush1.msra.mxu0 %v160
    %178 = vmatprep.subr.mxu0 0.0
    %179 = vmatpush1.msra.mxu0 %v161
    %180 = vmatprep.subr.mxu0 0.0
    %181 = vmatpush1.msra.mxu0 %v162
    %182 = vmatprep.subr.mxu0 0.0
    %183 = vmatpush1.msra.mxu0 0.0
    %184 = vmatprep.subr.mxu0 0.0
    %185 = vmatpush1.msra.mxu0 0.0
    %186 = vmatprep.subr.mxu0 0.0
    %187 = vmatpush1.msra.mxu0 0.0
    %188 = vmatprep.subr.mxu0 0.0
    %189 = vmatpush1.msra.mxu0 0.0
    %190 = vmatprep.subr.mxu0 0.0
    %191 = vmatpush1.msra.mxu0 0.0
    %192 = vmatprep.subr.mxu0 0.0
    %193 = vmatpush1.msra.mxu0 0.0
    %194 = vmatprep.subr.mxu0 0.0
    %195 = vmatpush1.msra.mxu0 0.0
    %196 = vmatprep.subr.mxu0 0.0
    %197 = vmatpush1.msra.mxu0 0.0
    %198 = vmatprep.subr.mxu0 0.0
    %199 = vmatpush1.msra.mxu0 0.0
    %200 = vmatprep.subr.mxu0 0.0
    %201 = vmatpush1.msra.mxu0 0.0
    %202 = vmatprep.subr.mxu0 0.0
    %203 = vmatpush1.msra.mxu0 0.0
    %204 = vmatprep.subr.mxu0 0.0
    %205 = vmatpush1.msra.mxu0 0.0
    %206 = vmatprep.subr.mxu0 0.0
    %207 = vmatpush1.msra.mxu0 0.0
    %208 = vmatprep.subr.mxu0 0.0
    %209 = vmatpush1.msra.mxu0 0.0
    %210 = vmatprep.subr.mxu0 0.0
    %211 = vmatpush1.msra.mxu0 0.0
    %212 = vmatprep.subr.mxu0 0.0
    %213 = vmatpush1.msra.mxu0 0.0
    %214 = vmatprep.subr.mxu0 0.0
    %215 = vmatpush1.msra.mxu0 0.0
    %216 = vmatprep.subr.mxu0 0.0
    %217 = vmatpush1.msra.mxu0 0.0
    %218 = vmatprep.subr.mxu0 0.0
    %219 = vmatpush1.msra.mxu0 0.0
    %220 = vmatprep.subr.mxu0 0.0
    %221 = vmatpush1.msra.mxu0 0.0
    %222 = vmatprep.subr.mxu0 0.0
    %223 = vmatpush1.msra.mxu0 0.0
    %224 = vmatprep.subr.mxu0 0.0
    %225 = vmatpush1.msra.mxu0 0.0
    %226 = vmatprep.subr.mxu0 0.0
    %227 = vmatpush1.msra.mxu0 0.0
    %228 = vmatprep.subr.mxu0 0.0
    %229 = vmatpush1.msra.mxu0 0.0
    %230 = vmatprep.subr.mxu0 0.0
    %231 = vmatpush1.msra.mxu0 0.0
    %232 = vmatprep.subr.mxu0 0.0
    %233 = vmatpush1.msra.mxu0 0.0
    %234 = vmatprep.subr.mxu0 0.0
    %235 = vmatpush1.msra.mxu0 0.0
    %236 = vmatprep.subr.mxu0 0.0
    %237 = vmatpush1.msra.mxu0 0.0
    %238 = vmatprep.mubr.f32.mxu0 0.0
    %239 = vmatmul.mubr.f32.gmra.mrb[0].mxu0 %v172
    %v240 = vpop.f32.mrb[0].mxu0
    %v241 = vadd.f32 %v168, %v240
    %v242 = vpop.f32.mrb[0].mxu0
    %243 = vdwg.mxu0
    %v244 = vmax.f32 %v241, 0.0
    %v245 = vld [vmem:[#allocation8] sm:$0xff]
    %v246 = vld [vmem:[#allocation8 + $0x8] sm:$0xff]
    %v247 = vld [vmem:[#allocation8 + $0x10] sm:$0xff]
    %v248 = vld [vmem:[#allocation8 + $0x18] sm:$0xff]
    %v249 = vld [vmem:[%s4 + $0x2] sm:$0x1]
    %v251 = vlaneseq
    %v252 = vshrl.u32 %v251, 7
    %v253 = vsub.s32 0, %v252
    %v254 = vrot.slane %v249, %v253
    %v257 = vsel %vm170, %v244, 0
    %259 = vmatprep.subr.mxu0 0.0
    %260 = vmatpush1.msra.mxu0 %v245
    %261 = vmatprep.subr.mxu0 0.0
    %262 = vmatpush1.msra.mxu0 %v246
    %263 = vmatprep.subr.mxu0 0.0
    %264 = vmatpush1.msra.mxu0 %v247
    %265 = vmatprep.subr.mxu0 0.0
    %266 = vmatpush1.msra.mxu0 %v248
    %267 = vmatprep.subr.mxu0 0.0
    %268 = vmatpush1.msra.mxu0 0.0
    %269 = vmatprep.subr.mxu0 0.0
    %270 = vmatpush1.msra.mxu0 0.0
    %271 = vmatprep.subr.mxu0 0.0
    %272 = vmatpush1.msra.mxu0 0.0
    %273 = vmatprep.subr.mxu0 0.0
    %274 = vmatpush1.msra.mxu0 0.0
    %275 = vmatprep.subr.mxu0 0.0
    %276 = vmatpush1.msra.mxu0 0.0
    %277 = vmatprep.subr.mxu0 0.0
    %278 = vmatpush1.msra.mxu0 0.0
    %279 = vmatprep.subr.mxu0 0.0
    %280 = vmatpush1.msra.mxu0 0.0
    %281 = vmatprep.subr.mxu0 0.0
    %282 = vmatpush1.msra.mxu0 0.0
    %283 = vmatprep.subr.mxu0 0.0
    %284 = vmatpush1.msra.mxu0 0.0
    %285 = vmatprep.subr.mxu0 0.0
    %286 = vmatpush1.msra.mxu0 0.0
    %287 = vmatprep.subr.mxu0 0.0
    %288 = vmatpush1.msra.mxu0 0.0
    %289 = vmatprep.subr.mxu0 0.0
    %290 = vmatpush1.msra.mxu0 0.0
    %291 = vmatprep.subr.mxu0 0.0
    %292 = vmatpush1.msra.mxu0 0.0
    %293 = vmatprep.subr.mxu0 0.0
    %294 = vmatpush1.msra.mxu0 0.0
    %295 = vmatprep.subr.mxu0 0.0
    %296 = vmatpush1.msra.mxu0 0.0
    %297 = vmatprep.subr.mxu0 0.0
    %298 = vmatpush1.msra.mxu0 0.0
    %299 = vmatprep.subr.mxu0 0.0
    %300 = vmatpush1.msra.mxu0 0.0
    %301 = vmatprep.subr.mxu0 0.0
    %302 = vmatpush1.msra.mxu0 0.0
    %303 = vmatprep.subr.mxu0 0.0
    %304 = vmatpush1.msra.mxu0 0.0
    %305 = vmatprep.subr.mxu0 0.0
    %306 = vmatpush1.msra.mxu0 0.0
    %307 = vmatprep.subr.mxu0 0.0
    %308 = vmatpush1.msra.mxu0 0.0
    %309 = vmatprep.subr.mxu0 0.0
    %310 = vmatpush1.msra.mxu0 0.0
    %311 = vmatprep.subr.mxu0 0.0
    %312 = vmatpush1.msra.mxu0 0.0
    %313 = vmatprep.subr.mxu0 0.0
    %314 = vmatpush1.msra.mxu0 0.0
    %315 = vmatprep.subr.mxu0 0.0
    %316 = vmatpush1.msra.mxu0 0.0
    %317 = vmatprep.subr.mxu0 0.0
    %318 = vmatpush1.msra.mxu0 0.0
    %319 = vmatprep.subr.mxu0 0.0
    %320 = vmatpush1.msra.mxu0 0.0
    %321 = vmatprep.subr.mxu0 0.0
    %322 = vmatpush1.msra.mxu0 0.0
    %323 = vmatprep.mubr.f32.mxu0 0.0
    %324 = vmatmul.mubr.f32.gmra.mrb[0].mxu0 %v257
    %v325 = vpop.f32.mrb[0].mxu0
    %v326 = vadd.f32 %v254, %v325
    %v327 = vpop.f32.mrb[0].mxu0
    %328 = vdwg.mxu0
    %329 = vst [vmem:[#allocation10] sm:$0xff] %v326
    // Predicated region
    $region38: #{tpu_custom_call.1} parent=1 // pred_check
      _
    $region39: #{tpu_custom_call.1} parent=1 // pred_check_branch
      %331 = sbr.rel (0) target = $region41
    $region40: #{tpu_custom_call.1} parent=1 // pred_region
      %s333 = ssub.s32 128, 128
      %334 = vsyncadd [#allocation4], %s333
      %s336 = sshll.u32 [#allocation10], 4
      %s337 = int_to_ptr.vmem [resolvable:$true] %s336
      %339 = dma.vmem_to_hbm [thread:$0]  %s337, 128, %s5, [#allocation4]
    $region41: #{tpu_custom_call.1} parent=1 // pred_fallthru
      _
    // Predicated region
    $region42: #{tpu_custom_call.1} parent=1 // pred_check
      _
    $region43: #{tpu_custom_call.1} parent=1 // pred_check_branch
      %341 = sbr.rel (0) target = $region45
    $region44: #{tpu_custom_call.1} parent=1 // pred_region
      %342 = dma.done [#allocation4], 128
    $region45: #{tpu_custom_call.1} parent=1 // pred_fallthru
      _
    %343 = vsyncpa [#allocation3], 1
    %344 = vsyncpa [#allocation6], 1
    %345 = vsyncpa [#allocation9], 1
    %346 = vsyncpa [#allocation4], 1

</llo_original>
